<compile_context>
chip_gen: v7x
topology: tpu7x:2x2x1
jax: 0.10.0
libtpu: 0.0.40
codegen_flags: <defaults>
</compile_context>

<pallas_src>
import jax
import jax.numpy as jnp
from jax.experimental import pallas as pl
from jax.experimental.pallas import tpu as pltpu


def _round_up(x, m):
    return (x + m - 1) // m * m


# -----------------------------------------------------------------------------
# Stage 1: copy attention + copy gate (small, once per batch element).
# -----------------------------------------------------------------------------
def _attn_copy_kernel(dec_ref, encT_ref, mask_ref, wa_ref, wcopy_ref,
                      copyw_ref, pcopy_ref):
    dec = dec_ref[0]                                                    # (T, D) bf16
    # "general" bilinear attention: (dec @ W_a) @ enc^T
    q = jnp.dot(dec, wa_ref[...], preferred_element_type=jnp.float32)   # (T, D) f32
    scores = jnp.dot(q.astype(jnp.bfloat16), encT_ref[0],
                     preferred_element_type=jnp.float32)                # (T, S_pad) f32
    masked = mask_ref[0] > 0.5                                          # (1, S_pad)
    scores = jnp.where(masked, -1e30, scores)
    smax = jnp.max(scores, axis=-1, keepdims=True)
    sexp = jnp.where(masked, 0.0, jnp.exp(scores - smax))               # hard-zero padded cols
    ssum = jnp.maximum(jnp.sum(sexp, axis=-1, keepdims=True), 1e-30)    # guard all-masked rows
    copy_scores = sexp / ssum                                           # (T, S_pad)

    # copy gate on the VPU; EXACT sigmoid (approx reciprocal can overshoot 1).
    pc_logit = jnp.sum(dec.astype(jnp.float32) * wcopy_ref[...],
                       axis=-1, keepdims=True)                          # (T, 1)
    p_copy = 1.0 / (1.0 + jnp.exp(-pc_logit))

    pcopy_ref[0] = p_copy
    copyw_ref[0] = copy_scores * (1.0 - p_copy)                         # (T, S_pad)


# -----------------------------------------------------------------------------
# Stage 2: vocab logits (single W_tgt pass) + copy mixture + log.
# -----------------------------------------------------------------------------
def _vocab_mix_kernel(hascopy_ref, dec_ref, pcopy_ref, copyw_ref, ids_ref,
                      wtgt_ref, btgt_ref, out_ref, cache_ref, m_ref, l_ref):
    phase = pl.program_id(0)           # 0: stream W_tgt once, cache logits + softmax stats
    j = pl.program_id(1)               # vocab tile index
    tile_v = wtgt_ref.shape[1]
    col0 = pl.multiple_of(j * tile_v, tile_v)

    @pl.when((phase == 0) & (j == 0))
    def _():
        m_ref[...] = jnp.full(m_ref.shape, -jnp.inf, m_ref.dtype)
        l_ref[...] = jnp.zeros(l_ref.shape, l_ref.dtype)

    # ---- phase 0: single pass over W_tgt; logits cached in VMEM -------------
    @pl.when(phase == 0)
    def _():
        logits = jnp.dot(dec_ref[...], wtgt_ref[...],
                         preferred_element_type=jnp.float32) + btgt_ref[...]  # (B*T, tV)
        cache_ref[:, pl.ds(col0, tile_v)] = logits
        m_prev = m_ref[...]
        m_new = jnp.maximum(m_prev, jnp.max(logits, axis=-1, keepdims=True))
        l_ref[...] = (l_ref[...] * jnp.exp(m_prev - m_new)
                      + jnp.sum(jnp.exp(logits - m_new), axis=-1, keepdims=True))
        m_ref[...] = m_new

    # ---- phase 1: normalize cached logits, mix with copy distribution -------
    def vocab_probs_tile():
        logits = cache_ref[:, pl.ds(col0, tile_v)]
        inv_l = pl.reciprocal(l_ref[...], approx=True)
        return pcopy_ref[...] * jnp.exp(logits - m_ref[...]) * inv_l          # (B*T, tV)

    @pl.when((phase == 1) & (hascopy_ref[j] == 0))
    def _():
        # no source token falls in this vocab tile: skip the one-hot / copy matmul.
        out_ref[...] = jnp.log(vocab_probs_tile())

    @pl.when((phase == 1) & (hascopy_ref[j] != 0))
    def _():
        nb = copyw_ref.shape[0]
        s_pad = ids_ref.shape[1]
        vocab_ids = (jax.lax.broadcasted_iota(jnp.int32, (s_pad, tile_v), 1)
                     + j * tile_v)                                             # (S_pad, tV)
        parts = []
        for b in range(nb):            # static unroll over batch
            one_hot = (ids_ref[b] == vocab_ids).astype(jnp.bfloat16)           # (S_pad, tV)
            parts.append(jnp.dot(copyw_ref[b].astype(jnp.bfloat16), one_hot,
                                 preferred_element_type=jnp.float32))          # (T, tV)
        copy_probs = jnp.concatenate(parts, axis=0)                            # (B*T, tV)
        out_ref[...] = jnp.log(vocab_probs_tile() + copy_probs)


def copynet_forward(dec, enc, src_ids, pad_mask, w_a, w_copy, w_tgt, b_tgt,
                    *, tile_v=512):
    B, T, D = dec.shape
    S = enc.shape[1]
    V = w_tgt.shape[1]
    BT = B * T
    S_pad = max(_round_up(S, 128), 128)
    V_pad = _round_up(max(V, tile_v), tile_v)
    n_v = V_pad // tile_v

    # ---- wrapper-side layout plumbing (lane-dense blocks inside kernels) ----
    dec_b = dec.astype(jnp.bfloat16)                                     # (B, T, D)
    encT = jnp.pad(jnp.transpose(enc, (0, 2, 1)).astype(jnp.bfloat16),
                   ((0, 0), (0, 0), (0, S_pad - S)))                     # (B, D, S_pad)
    mask = jnp.pad(pad_mask.astype(jnp.float32),
                   ((0, 0), (0, S_pad - S)), constant_values=1.0)[:, None, :]  # (B,1,Sp)
    w_a_b = w_a.astype(jnp.bfloat16)
    w_copy_r = w_copy.reshape(1, D).astype(jnp.float32)

    # ---- stage 1: attention + copy gate (batch-parallel, tiny) --------------
    copyw, p_copy = pl.pallas_call(
        _attn_copy_kernel,
        out_shape=(jax.ShapeDtypeStruct((B, T, S_pad), jnp.float32),
                   jax.ShapeDtypeStruct((B, T, 1), jnp.float32)),
        grid=(B,),
        in_specs=[
            pl.BlockSpec((1, T, D),     lambda b: (b, 0, 0)),
            pl.BlockSpec((1, D, S_pad), lambda b: (b, 0, 0)),
            pl.BlockSpec((1, 1, S_pad), lambda b: (b, 0, 0)),
            pl.BlockSpec((D, D),        lambda b: (0, 0)),
            pl.BlockSpec((1, D),        lambda b: (0, 0)),
        ],
        out_specs=(
            pl.BlockSpec((1, T, S_pad), lambda b: (b, 0, 0)),
            pl.BlockSpec((1, T, 1),     lambda b: (b, 0, 0)),
        ),
        compiler_params=pltpu.CompilerParams(dimension_semantics=("parallel",)),
    )(dec_b, encT, mask, w_a_b, w_copy_r)

    # ---- stage 2 inputs ------------------------------------------------------
    dec_flat = dec_b.reshape(BT, D)               # batch folded into the MXU M dimension
    pcopy_flat = p_copy.reshape(BT, 1)
    ids = jnp.pad(src_ids.astype(jnp.int32),
                  ((0, 0), (0, S_pad - S)))[..., None]                   # (B, S_pad, 1)
    w_tgt_b = jnp.pad(w_tgt, ((0, 0), (0, V_pad - V))).astype(jnp.bfloat16)   # (D, V_pad)
    b_tgt_p = jnp.pad(b_tgt.astype(jnp.float32), (0, V_pad - V),
                      constant_values=-1e30)[None, :]                    # (1, V_pad)
    # per-vocab-tile "any copy mass" flag (over-inclusive is safe; skipping is the win)
    counts = jnp.zeros((n_v,), jnp.int32).at[
        (src_ids.reshape(-1) // tile_v).astype(jnp.int32)].add(1)
    has_copy = (counts > 0).astype(jnp.int32)

    last = n_v - 1
    # Stream W_tgt / b_tgt tiles in phase 0 only; pin the block index during phase 1
    # so Pallas never re-DMAs them (logits come from the VMEM cache instead).
    wtgt_map = lambda p, j, hc: (0, j * (1 - p) + last * p)

    out_flat = pl.pallas_call(
        _vocab_mix_kernel,
        out_shape=jax.ShapeDtypeStruct((BT, V_pad), jnp.float32),
        grid_spec=pltpu.PrefetchScalarGridSpec(
            num_scalar_prefetch=1,
            grid=(2, n_v),                           # (phase, vocab tile)
            in_specs=[
                pl.BlockSpec((BT, D),       lambda p, j, hc: (0, 0)),        # dec (resident)
                pl.BlockSpec((BT, 1),       lambda p, j, hc: (0, 0)),        # p_copy
                pl.BlockSpec((B, T, S_pad), lambda p, j, hc: (0, 0, 0)),     # copy weights
                pl.BlockSpec((B, S_pad, 1), lambda p, j, hc: (0, 0, 0)),     # src ids
                pl.BlockSpec((D, tile_v),   wtgt_map),                       # W_tgt tile
                pl.BlockSpec((1, tile_v),   wtgt_map),                       # b_tgt tile
            ],
            # phase-0 steps all alias output tile 0 (never stored); phase 1 streams
            # lane-dense real tiles -> each output tile written to HBM exactly once.
            out_specs=pl.BlockSpec((BT, tile_v), lambda p, j, hc: (0, p * j)),
            scratch_shapes=[
                pltpu.VMEM((BT, V_pad), jnp.float32),    # logits cache (single W_tgt pass)
                pltpu.VMEM((BT, 1), jnp.float32),        # running max (online softmax)
                pltpu.VMEM((BT, 1), jnp.float32),        # running sum-exp
            ],
        ),
        compiler_params=pltpu.CompilerParams(
            dimension_semantics=("arbitrary", "arbitrary")),
    )(has_copy, dec_flat, pcopy_flat, copyw, ids, w_tgt_b, b_tgt_p)

    return out_flat.reshape(B, T, V_pad)[:, :, :V]


def copynet_reference(dec, enc, src_ids, pad_mask, w_a, w_copy, w_tgt, b_tgt):
    """Pure-JAX f32 reference mirroring the PyTorch forward."""
    V = w_tgt.shape[1]
    src_map = jax.nn.one_hot(src_ids, V, dtype=jnp.float32)              # (B, S, V)
    scores = jnp.einsum('btd,de,bse->bts', dec, w_a, enc)
    scores = jnp.where(pad_mask[:, None, :] > 0.5, -1e30, scores)
    copy_scores = jax.nn.softmax(scores, axis=-1)
    p_copy = jax.nn.sigmoid(jnp.einsum('btd,d->bt', dec, w_copy))[..., None]
    logits = jnp.einsum('btd,dv->btv', dec, w_tgt) + b_tgt
    preds_probs = jax.nn.softmax(logits, axis=-1)
    vocab_probs = preds_probs * p_copy
    copy_probs = jnp.einsum('bts,bsv->btv', copy_scores * (1.0 - p_copy), src_map)
    return jnp.log(vocab_probs + copy_probs)


if __name__ == "__main__":
    # V pads to 2048 -> 4 vocab tiles at tile_v=512; src ids limited to [0, 900) so
    # tiles 0-1 carry copy mass and tiles 2-3 exercise the copy-skip path.
    B, T, S, D, V = 2, 8, 24, 128, 2000
    tile_v = 512

    key = jax.random.PRNGKey(0)
    ks = jax.random.split(key, 7)

    dec = jax.random.normal(ks[0], (B, T, D), dtype=jnp.float32)
    enc = jax.random.normal(ks[1], (B, S, D), dtype=jnp.float32)
    src_ids = jax.random.randint(ks[2], (B, S), 0, 900)

    # padding mask: last 8 source positions of batch element 1 are padded.
    pad_mask = jnp.zeros((B, S), dtype=jnp.float32).at[1, S - 8:].set(1.0)

    # synthetic parameters (deterministic init, not a checkpoint load).
    w_a    = jax.random.normal(ks[3], (D, D), dtype=jnp.float32) * 0.01  # attention bilinear
    w_copy = jax.random.normal(ks[4], (D,),   dtype=jnp.float32) * 0.05  # linear_copy (no bias)
    w_tgt  = jax.random.normal(ks[5], (D, V), dtype=jnp.float32) * 0.05  # linear_tgt weight^T
    b_tgt  = jax.random.normal(ks[6], (V,),   dtype=jnp.float32) * 0.1   # linear_tgt bias

    out = copynet_forward(dec, enc, src_ids, pad_mask, w_a, w_copy, w_tgt, b_tgt,
                          tile_v=tile_v)
    out = jax.block_until_ready(out)

    ref = copynet_reference(dec, enc, src_ids, pad_mask, w_a, w_copy, w_tgt, b_tgt)
    assert out.shape == (B, T, V)
    max_err = float(jnp.max(jnp.abs(out - ref)))
    assert jnp.allclose(out, ref, rtol=5e-2, atol=5e-2), \
        f"mismatch vs reference (bf16-MXU kernel vs f32 ref), max|err|={max_err}"

    print("KERNEL_OK")
</pallas_src>

<mosaic_0001>
module attributes {stable_mosaic.version = 11 : i64} {
  func.func @_attn_copy_kernel(%arg0: i32, %arg1: memref<1x8x128xbf16, #tpu.memory_space<vmem>>, %arg2: memref<1x128x128xbf16, #tpu.memory_space<vmem>>, %arg3: memref<1x1x128xf32, #tpu.memory_space<vmem>>, %arg4: memref<128x128xbf16, #tpu.memory_space<vmem>>, %arg5: memref<1x128xf32, #tpu.memory_space<vmem>>, %arg6: memref<1x8x128xf32, #tpu.memory_space<vmem>>, %arg7: memref<1x8x1xf32, #tpu.memory_space<vmem>>) attributes {dimension_semantics = [#tpu.dimension_semantics<parallel>], iteration_bounds = array<i64: 2>, scalar_prefetch = 0 : i64, scratch_operands = 0 : i64, tpu.core_type = #tpu.core_type<tc>, window_params = [{transform_indices = @transform_0, window_bounds = array<i64: 1, 8, 128>}, {transform_indices = @transform_1, window_bounds = array<i64: 1, 128, 128>}, {transform_indices = @transform_2, window_bounds = array<i64: 1, 1, 128>}, {pipeline_mode = #tpu.pipeline_mode<synchronous>, transform_indices = @transform_3, window_bounds = array<i64: 128, 128>}, {pipeline_mode = #tpu.pipeline_mode<synchronous>, transform_indices = @transform_4, window_bounds = array<i64: 1, 128>}, {transform_indices = @transform_5, window_bounds = array<i64: 1, 8, 128>}, {transform_indices = @transform_6, window_bounds = array<i64: 1, 8, 1>}]} {
    %c0 = arith.constant 0 : index
    %c0_0 = arith.constant 0 : index
    %c0_1 = arith.constant 0 : index
    %0 = vector.load %arg1[%c0, %c0_0, %c0_1] : memref<1x8x128xbf16, #tpu.memory_space<vmem>>, vector<1x8x128xbf16>
    %1 = vector.shape_cast %0 : vector<1x8x128xbf16> to vector<8x128xbf16>
    %c0_2 = arith.constant 0 : index
    %c0_3 = arith.constant 0 : index
    %2 = vector.load %arg4[%c0_2, %c0_3] : memref<128x128xbf16, #tpu.memory_space<vmem>>, vector<128x128xbf16>
    %cst = arith.constant dense<0.000000e+00> : vector<8x128xf32>
    %3 = tpu.matmul %1, %2, %cst {dimension_numbers = #tpu.dot_dimension_numbers<[1], [0], [0], [1], [0, 0, 1, 1], [], []>} : vector<8x128xbf16>, vector<128x128xbf16>, vector<8x128xf32> -> vector<8x128xf32>
    %4 = arith.truncf %3 : vector<8x128xf32> to vector<8x128xbf16>
    %c0_4 = arith.constant 0 : index
    %c0_5 = arith.constant 0 : index
    %c0_6 = arith.constant 0 : index
    %5 = vector.load %arg2[%c0_4, %c0_5, %c0_6] : memref<1x128x128xbf16, #tpu.memory_space<vmem>>, vector<1x128x128xbf16>
    %6 = vector.shape_cast %5 : vector<1x128x128xbf16> to vector<128x128xbf16>
    %cst_7 = arith.constant dense<0.000000e+00> : vector<8x128xf32>
    %7 = tpu.matmul %4, %6, %cst_7 {dimension_numbers = #tpu.dot_dimension_numbers<[1], [0], [0], [1], [0, 0, 1, 1], [], []>} : vector<8x128xbf16>, vector<128x128xbf16>, vector<8x128xf32> -> vector<8x128xf32>
    %c0_8 = arith.constant 0 : index
    %c0_9 = arith.constant 0 : index
    %c0_10 = arith.constant 0 : index
    %8 = vector.load %arg3[%c0_8, %c0_9, %c0_10] : memref<1x1x128xf32, #tpu.memory_space<vmem>>, vector<1x1x128xf32>
    %9 = vector.shape_cast %8 : vector<1x1x128xf32> to vector<1x128xf32>
    %cst_11 = arith.constant 5.000000e-01 : f32
    %10 = vector.broadcast %cst_11 : f32 to vector<1x128xf32>
    %11 = arith.cmpf ogt, %9, %10 : vector<1x128xf32>
    %cst_12 = arith.constant -1.000000e+30 : f32
    %12 = vector.shape_cast %11 : vector<1x128xi1> to vector<1x128xi1>
    %13 = vector.broadcast %12 : vector<1x128xi1> to vector<8x128xi1>
    %14 = vector.broadcast %cst_12 : f32 to vector<8x128xf32>
    %15 = arith.select %13, %14, %7 : vector<8x128xi1>, vector<8x128xf32>
    %cst_13 = arith.constant dense<0xFF800000> : vector<8xf32>
    %16 = vector.multi_reduction <maximumf>, %15, %cst_13 [1] : vector<8x128xf32> to vector<8xf32>
    %17 = vector.shape_cast %16 : vector<8xf32> to vector<8x1xf32>
    %18 = vector.broadcast %17 : vector<8x1xf32> to vector<8x128xf32>
    %19 = arith.subf %15, %18 : vector<8x128xf32>
    %20 = math.exp %19 : vector<8x128xf32>
    %cst_14 = arith.constant 0.000000e+00 : f32
    %21 = vector.shape_cast %11 : vector<1x128xi1> to vector<1x128xi1>
    %22 = vector.broadcast %21 : vector<1x128xi1> to vector<8x128xi1>
    %23 = vector.broadcast %cst_14 : f32 to vector<8x128xf32>
    %24 = arith.select %22, %23, %20 : vector<8x128xi1>, vector<8x128xf32>
    %cst_15 = arith.constant dense<0.000000e+00> : vector<8xf32>
    %25 = vector.multi_reduction <add>, %24, %cst_15 [1] : vector<8x128xf32> to vector<8xf32>
    %26 = vector.shape_cast %25 : vector<8xf32> to vector<8x1xf32>
    %cst_16 = arith.constant 1.000000e-30 : f32
    %27 = vector.broadcast %cst_16 : f32 to vector<8x1xf32>
    %28 = arith.maximumf %26, %27 : vector<8x1xf32>
    %29 = vector.broadcast %28 : vector<8x1xf32> to vector<8x128xf32>
    %30 = arith.divf %24, %29 : vector<8x128xf32>
    %31 = arith.extf %1 : vector<8x128xbf16> to vector<8x128xf32>
    %c0_17 = arith.constant 0 : index
    %c0_18 = arith.constant 0 : index
    %32 = vector.load %arg5[%c0_17, %c0_18] : memref<1x128xf32, #tpu.memory_space<vmem>>, vector<1x128xf32>
    %33 = vector.broadcast %32 : vector<1x128xf32> to vector<8x128xf32>
    %34 = arith.mulf %31, %33 : vector<8x128xf32>
    %cst_19 = arith.constant dense<0.000000e+00> : vector<8xf32>
    %35 = vector.multi_reduction <add>, %34, %cst_19 [1] : vector<8x128xf32> to vector<8xf32>
    %36 = vector.shape_cast %35 : vector<8xf32> to vector<8x1xf32>
    %cst_20 = arith.constant 0.000000e+00 : f32
    %37 = vector.broadcast %cst_20 : f32 to vector<8x1xf32>
    %38 = arith.subf %37, %36 : vector<8x1xf32>
    %39 = math.exp %38 : vector<8x1xf32>
    %cst_21 = arith.constant 1.000000e+00 : f32
    %40 = vector.broadcast %cst_21 : f32 to vector<8x1xf32>
    %41 = arith.addf %40, %39 : vector<8x1xf32>
    %cst_22 = arith.constant 1.000000e+00 : f32
    %42 = vector.broadcast %cst_22 : f32 to vector<8x1xf32>
    %43 = arith.divf %42, %41 : vector<8x1xf32>
    %c0_23 = arith.constant 0 : index
    %c0_24 = arith.constant 0 : index
    %c0_25 = arith.constant 0 : index
    %44 = vector.load %arg7[%c0_23, %c0_24, %c0_25] : memref<1x8x1xf32, #tpu.memory_space<vmem>>, vector<1x8x1xf32>
    %45 = vector.shape_cast %44 : vector<1x8x1xf32> to vector<8x1xf32>
    %46 = vector.shape_cast %43 : vector<8x1xf32> to vector<1x8x1xf32>
    tpu.vector_store %arg7[%c0_23, %c0_24, %c0_25], %46 {strides = array<i32>} : memref<1x8x1xf32, #tpu.memory_space<vmem>>, vector<1x8x1xf32>,
    %cst_26 = arith.constant 1.000000e+00 : f32
    %47 = vector.broadcast %cst_26 : f32 to vector<8x1xf32>
    %48 = arith.subf %47, %43 : vector<8x1xf32>
    %49 = vector.broadcast %48 : vector<8x1xf32> to vector<8x128xf32>
    %50 = arith.mulf %30, %49 : vector<8x128xf32>
    %c0_27 = arith.constant 0 : index
    %c0_28 = arith.constant 0 : index
    %c0_29 = arith.constant 0 : index
    %51 = vector.load %arg6[%c0_27, %c0_28, %c0_29] : memref<1x8x128xf32, #tpu.memory_space<vmem>>, vector<1x8x128xf32>
    %52 = vector.shape_cast %51 : vector<1x8x128xf32> to vector<8x128xf32>
    %53 = vector.shape_cast %50 : vector<8x128xf32> to vector<1x8x128xf32>
    tpu.vector_store %arg6[%c0_27, %c0_28, %c0_29], %53 {strides = array<i32>} : memref<1x8x128xf32, #tpu.memory_space<vmem>>, vector<1x8x128xf32>,
    return
  }
  func.func @transform_0(%arg0: i32) -> (i32, i32, i32) {
    %c0_i32 = arith.constant 0 : i32
    %c0_i32_0 = arith.constant 0 : i32
    %c0_i32_1 = arith.constant 0 : i32
    return %arg0, %c0_i32, %c0_i32_0 : i32, i32, i32
  }
  func.func @transform_1(%arg0: i32) -> (i32, i32, i32) {
    %c0_i32 = arith.constant 0 : i32
    %c0_i32_0 = arith.constant 0 : i32
    %c0_i32_1 = arith.constant 0 : i32
    return %arg0, %c0_i32, %c0_i32_0 : i32, i32, i32
  }
  func.func @transform_2(%arg0: i32) -> (i32, i32, i32) {
    %c0_i32 = arith.constant 0 : i32
    %c0_i32_0 = arith.constant 0 : i32
    %c0_i32_1 = arith.constant 0 : i32
    return %arg0, %c0_i32, %c0_i32_0 : i32, i32, i32
  }
  func.func @transform_3(%arg0: i32) -> (i32, i32) {
    %c0_i32 = arith.constant 0 : i32
    %c0_i32_0 = arith.constant 0 : i32
    %c0_i32_1 = arith.constant 0 : i32
    return %c0_i32, %c0_i32_0 : i32, i32
  }
  func.func @transform_4(%arg0: i32) -> (i32, i32) {
    %c0_i32 = arith.constant 0 : i32
    %c0_i32_0 = arith.constant 0 : i32
    %c0_i32_1 = arith.constant 0 : i32
    return %c0_i32, %c0_i32_0 : i32, i32
  }
  func.func @transform_5(%arg0: i32) -> (i32, i32, i32) {
    %c0_i32 = arith.constant 0 : i32
    %c0_i32_0 = arith.constant 0 : i32
    %c0_i32_1 = arith.constant 0 : i32
    return %arg0, %c0_i32, %c0_i32_0 : i32, i32, i32
  }
  func.func @transform_6(%arg0: i32) -> (i32, i32, i32) {
    %c0_i32 = arith.constant 0 : i32
    %c0_i32_0 = arith.constant 0 : i32
    %c0_i32_1 = arith.constant 0 : i32
    return %arg0, %c0_i32, %c0_i32_0 : i32, i32, i32
  }
}

</mosaic_0001>

<llo_original>
// kernel: tpu_custom_call.1
$region0: #{tpu_custom_call.1}
  #allocation0 [shape = 'u32[]', space=smem, size = 0x4, offset = 0x4, fixed_abs, tag = 'smem constant byte address 0x4 - core index']
  #allocation1 [shape = 'u32[144,128]{1,0:T(1,128)}', space=vmem, size = 0x12000, scoped, tag = 'internal scratch']
  %s0 = inlined_call_operand.hbm [shape: bf16[2,8,128], index: 0, kind: input, shape index: {}]
  %s1 = inlined_call_operand.hbm [shape: bf16[2,128,128], index: 1, kind: input, shape index: {}]
  %s2 = inlined_call_operand.vmem [shape: f32[2,1,128], index: 2, kind: input, shape index: {}]
  %s3 = inlined_call_operand.hbm [shape: bf16[128,128], index: 3, kind: input, shape index: {}]
  %s4 = inlined_call_operand.vmem [shape: f32[1,128], index: 4, kind: input, shape index: {}]
  %s5 = inlined_call_operand.hbm [shape: f32[2,8,128], index: 5, kind: output, shape index: {0}]
  %s6 = inlined_call_operand.vmem [shape: f32[2,8,1], index: 6, kind: output, shape index: {1}]
  %7 = xla_tuple %s5, %s6
  %s8 = sld [smem:[#allocation0]]
  $region73: #{tpu_custom_call.1} parent=0
    _
  %s10 = ssub.s32 1, %s8
  %s11 = scalar_select 0, %s10, %s8
  $region1: #{tpu_custom_call.1} parent=0
    #allocation2 [shape = 'u8[4096]{0}', space=vmem, size = 0x1000, scoped, tag = 'input window, operand 0']
    #allocation3 [shape = 's32[2]{0}', space=sflag, size = 0x8, scoped, tag = 'scoped memory for tpu_custom_call.1']
    #allocation4 [shape = 's32[2]{0}', space=sflag, size = 0x8, scoped, tag = 'scoped memory for tpu_custom_call.1']
    #allocation5 [shape = 'u8[65536]{0}', space=vmem, size = 0x10000, scoped, tag = 'input window, operand 1']
    #allocation6 [shape = 's32[2]{0}', space=sflag, size = 0x8, scoped, tag = 'scoped memory for tpu_custom_call.1']
    #allocation7 [shape = 'u8[32768]{0}', space=vmem, size = 0x8000, scoped, tag = 'input window, operand 3, single buffered']
    #allocation8 [shape = 'u8[8192]{0}', space=vmem, size = 0x2000, scoped, tag = 'output window, operand 0']
    %12 = vsyncpa [#allocation3], 0
    %s13 = scalar_lea.sflag [#allocation3], 1
    %14 = vsyncpa %s13, 0
    %15 = vsyncpa [#allocation6], 0
    %s16 = scalar_lea.sflag [#allocation6], 1
    %17 = vsyncpa %s16, 0
    %18 = vsyncpa [#allocation4], 0
    %s19 = scalar_lea.sflag [#allocation4], 1
    %20 = vsyncpa %s19, 0
    loop: start=0, step=1, limit=4
    $region2: #{tpu_custom_call.1} parent=1 // loop_pre_header
      _
    $region3: #{tpu_custom_call.1} parent=1 // loop_header
      %s22 = sphi 0, %s26
      %p23 = scmp.ge.s32.totalorder %s22, 4
      %s32 = sphi 0, %s34
      %s35 = sphi 0, %s32
      %s36 = sphi 0, %s35
      %s52 = sphi 0, %s36
      %s58 = sphi 0, %s60
      %s61 = sphi 0, %s58
      %s62 = sphi 0, %s61
      %s78 = sphi 0, %s62
      %s84 = sphi 0, %s86
      %s87 = sphi 0, %s84
      %s88 = sphi 0, %s87
      %s104 = sphi 0, %s88
      %s108 = sphi 0, %s108
      %s110 = sphi 0, %s108
      %s111 = sphi 0, %s110
      %s125 = sphi 0, %s111
      %s129 = sphi 0, %s129
      %s131 = sphi 0, %s129
      %s132 = sphi 0, %s131
      %s146 = sphi 0, %s132
      %s152 = sphi 0, %s154
      %s155 = sphi 0, %s152
      %s156 = sphi 0, %s155
      %s172 = sphi 0, %s156
      %s178 = sphi 0, %s180
      %s181 = sphi 0, %s178
      %s182 = sphi 0, %s181
      %s198 = sphi 0, %s182
    $region4: #{tpu_custom_call.1} parent=1 // loop_header_branch
      %25 = sbr.rel (%p23) target = $region8
    $region5: #{tpu_custom_call.1} parent=1 // loop_body
      %s27 = ssub.s32 %s22, 1
      %s28 = ssub.s32 %s22, 2
      %s29 = sadd.s32 %s22, 1
      %s30 = ssub.s32 %s22, %s29
      %p31 = scmp.eq.s32.totalorder %s30, 0
      %s33 = sadd.s32 %s32, 1
      %s34 = scalar_select %p31, %s32, %s33
      %p37 = pneg %p31
      %p38 = scmp.eq.s32.totalorder %s22, 1
      %p39 = por %p37, %p38
      %p40 = scmp.ne.s32.totalorder %s32, %s35
      %p41 = scmp.eq.s32.totalorder %s22, 0
      %p42 = por %p40, %p41
      %p43 = scmp.ne.s32.totalorder %s32, %s35
      %p44 = scmp.eq.s32.totalorder %s27, 1
      %p45 = por %p43, %p44
      %p46 = scmp.ne.s32.totalorder %s35, %s36
      %p47 = scmp.eq.s32.totalorder %s27, 0
      %p48 = por %p46, %p47
      %p49 = scmp.ne.s32.totalorder %s35, %s36
      %p50 = scmp.eq.s32.totalorder %s28, 1
      %p51 = por %p49, %p50
      %p53 = scmp.ne.s32.totalorder %s36, %s52
      %p54 = scmp.eq.s32.totalorder %s28, 0
      %p55 = por %p53, %p54
      %s56 = ssub.s32 %s22, %s29
      %p57 = scmp.eq.s32.totalorder %s56, 0
      %s59 = sadd.s32 %s58, 1
      %s60 = scalar_select %p57, %s58, %s59
      %p63 = pneg %p57
      %p64 = scmp.eq.s32.totalorder %s22, 1
      %p65 = por %p63, %p64
      %p66 = scmp.ne.s32.totalorder %s58, %s61
      %p67 = scmp.eq.s32.totalorder %s22, 0
      %p68 = por %p66, %p67
      %p69 = scmp.ne.s32.totalorder %s58, %s61
      %p70 = scmp.eq.s32.totalorder %s27, 1
      %p71 = por %p69, %p70
      %p72 = scmp.ne.s32.totalorder %s61, %s62
      %p73 = scmp.eq.s32.totalorder %s27, 0
      %p74 = por %p72, %p73
      %p75 = scmp.ne.s32.totalorder %s61, %s62
      %p76 = scmp.eq.s32.totalorder %s28, 1
      %p77 = por %p75, %p76
      %p79 = scmp.ne.s32.totalorder %s62, %s78
      %p80 = scmp.eq.s32.totalorder %s28, 0
      %p81 = por %p79, %p80
      %s82 = ssub.s32 %s22, %s29
      %p83 = scmp.eq.s32.totalorder %s82, 0
      %s85 = sadd.s32 %s84, 1
      %s86 = scalar_select %p83, %s84, %s85
      %p89 = pneg %p83
      %p90 = scmp.eq.s32.totalorder %s22, 1
      %p91 = por %p89, %p90
      %p92 = scmp.ne.s32.totalorder %s84, %s87
      %p93 = scmp.eq.s32.totalorder %s22, 0
      %p94 = por %p92, %p93
      %p95 = scmp.ne.s32.totalorder %s84, %s87
      %p96 = scmp.eq.s32.totalorder %s27, 1
      %p97 = por %p95, %p96
      %p98 = scmp.ne.s32.totalorder %s87, %s88
      %p99 = scmp.eq.s32.totalorder %s27, 0
      %p100 = por %p98, %p99
      %p101 = scmp.ne.s32.totalorder %s87, %s88
      %p102 = scmp.eq.s32.totalorder %s28, 1
      %p103 = por %p101, %p102
      %p105 = scmp.ne.s32.totalorder %s88, %s104
      %p106 = scmp.eq.s32.totalorder %s28, 0
      %p107 = por %p105, %p106
      %s109 = sadd.s32 %s108, 1
      %p112 = scmp.eq.s32.totalorder %s22, 1
      %p113 = scmp.ne.s32.totalorder %s108, %s110
      %p114 = scmp.eq.s32.totalorder %s22, 0
      %p115 = por %p113, %p114
      %p116 = scmp.ne.s32.totalorder %s108, %s110
      %p117 = scmp.eq.s32.totalorder %s27, 1
      %p118 = por %p116, %p117
      %p119 = scmp.ne.s32.totalorder %s110, %s111
      %p120 = scmp.eq.s32.totalorder %s27, 0
      %p121 = por %p119, %p120
      %p122 = scmp.ne.s32.totalorder %s110, %s111
      %p123 = scmp.eq.s32.totalorder %s28, 1
      %p124 = por %p122, %p123
      %p126 = scmp.ne.s32.totalorder %s111, %s125
      %p127 = scmp.eq.s32.totalorder %s28, 0
      %p128 = por %p126, %p127
      %s130 = sadd.s32 %s129, 1
      %p133 = scmp.eq.s32.totalorder %s22, 1
      %p134 = scmp.ne.s32.totalorder %s129, %s131
      %p135 = scmp.eq.s32.totalorder %s22, 0
      %p136 = por %p134, %p135
      %p137 = scmp.ne.s32.totalorder %s129, %s131
      %p138 = scmp.eq.s32.totalorder %s27, 1
      %p139 = por %p137, %p138
      %p140 = scmp.ne.s32.totalorder %s131, %s132
      %p141 = scmp.eq.s32.totalorder %s27, 0
      %p142 = por %p140, %p141
      %p143 = scmp.ne.s32.totalorder %s131, %s132
      %p144 = scmp.eq.s32.totalorder %s28, 1
      %p145 = por %p143, %p144
      %p147 = scmp.ne.s32.totalorder %s132, %s146
      %p148 = scmp.eq.s32.totalorder %s28, 0
      %p149 = por %p147, %p148
      %s150 = ssub.s32 %s22, %s29
      %p151 = scmp.eq.s32.totalorder %s150, 0
      %s153 = sadd.s32 %s152, 1
      %s154 = scalar_select %p151, %s152, %s153
      %p157 = pneg %p151
      %p158 = scmp.eq.s32.totalorder %s22, 1
      %p159 = por %p157, %p158
      %p160 = scmp.ne.s32.totalorder %s152, %s155
      %p161 = scmp.eq.s32.totalorder %s22, 0
      %p162 = por %p160, %p161
      %p163 = scmp.ne.s32.totalorder %s152, %s155
      %p164 = scmp.eq.s32.totalorder %s27, 1
      %p165 = por %p163, %p164
      %p166 = scmp.ne.s32.totalorder %s155, %s156
      %p167 = scmp.eq.s32.totalorder %s27, 0
      %p168 = por %p166, %p167
      %p169 = scmp.ne.s32.totalorder %s155, %s156
      %p170 = scmp.eq.s32.totalorder %s28, 1
      %p171 = por %p169, %p170
      %p173 = scmp.ne.s32.totalorder %s156, %s172
      %p174 = scmp.eq.s32.totalorder %s28, 0
      %p175 = por %p173, %p174
      %s176 = ssub.s32 %s22, %s29
      %p177 = scmp.eq.s32.totalorder %s176, 0
      %s179 = sadd.s32 %s178, 1
      %s180 = scalar_select %p177, %s178, %s179
      %p183 = pneg %p177
      %p184 = scmp.eq.s32.totalorder %s22, 1
      %p185 = por %p183, %p184
      %p186 = scmp.ne.s32.totalorder %s178, %s181
      %p187 = scmp.eq.s32.totalorder %s22, 0
      %p188 = por %p186, %p187
      %p189 = scmp.ne.s32.totalorder %s178, %s181
      %p190 = scmp.eq.s32.totalorder %s27, 1
      %p191 = por %p189, %p190
      %p192 = scmp.ne.s32.totalorder %s181, %s182
      %p193 = scmp.eq.s32.totalorder %s27, 0
      %p194 = por %p192, %p193
      %p195 = scmp.ne.s32.totalorder %s181, %s182
      %p196 = scmp.eq.s32.totalorder %s28, 1
      %p197 = por %p195, %p196
      %p199 = scmp.ne.s32.totalorder %s182, %s198
      %p200 = scmp.eq.s32.totalorder %s28, 0
      %p201 = por %p199, %p200
      %p202 = scmp.le.s32.totalorder 1, %s22
      %p203 = scmp.lt.s32.totalorder %s22, 3
      %p204 = pnand %p202, %p203
      %p205 = pneg %p204
      // Predicated region
      $region9: #{tpu_custom_call.1} parent=5 // pred_check
        _
      $region10: #{tpu_custom_call.1} parent=5 // pred_check_branch
        %207 = sbr.rel (%p204) target = $region12
      $region11: #{tpu_custom_call.1} parent=5 // pred_region
        %s208 = ssub.s32 %s22, 1
        // Predicated region
        $region13: #{tpu_custom_call.1} parent=11 // pred_check
          %p209 = pneg %p121
        $region14: #{tpu_custom_call.1} parent=11 // pred_check_branch
          %211 = sbr.rel (%p209) target = $region16
        $region15: #{tpu_custom_call.1} parent=11 // pred_region
          %s213 = ssub.s32 1024, 1024
          %214 = vsyncadd [#allocation6], %s213
          %s215 = sshll.u32 [#allocation7], 4
          %s216 = int_to_ptr.vmem [resolvable:$true] %s215
          %221 = dma.hbm_to_vmem [thread:$0]  %s3, 1024, %s216, [#allocation6], 64, 64, 4
        $region16: #{tpu_custom_call.1} parent=11 // pred_fallthru
          _
        // Predicated region
        $region17: #{tpu_custom_call.1} parent=11 // pred_check
          %p222 = pneg %p142
        $region18: #{tpu_custom_call.1} parent=11 // pred_check_branch
          %224 = sbr.rel (%p222) target = $region20
        $region19: #{tpu_custom_call.1} parent=11 // pred_region
          _
        $region20: #{tpu_custom_call.1} parent=11 // pred_fallthru
          _
      $region12: #{tpu_custom_call.1} parent=5 // pred_fallthru
        _
      %p225 = scmp.lt.s32.totalorder %s22, 2
      // Predicated region
      $region21: #{tpu_custom_call.1} parent=5 // pred_check
        %p226 = pneg %p225
      $region22: #{tpu_custom_call.1} parent=5 // pred_check_branch
        %228 = sbr.rel (%p226) target = $region24
      $region23: #{tpu_custom_call.1} parent=5 // pred_region
        // Predicated region
        $region25: #{tpu_custom_call.1} parent=23 // pred_check
          %p229 = pneg %p42
        $region26: #{tpu_custom_call.1} parent=23 // pred_check_branch
          %231 = sbr.rel (%p229) target = $region28
        $region27: #{tpu_custom_call.1} parent=23 // pred_region
          %s232 = sand.u32 %s32, 1
          %s233 = scalar_lea.sflag [#allocation3], %s232
          %s234 = sand.u32 %s32, 1
          %s235 = smul.addr %s234, 4
          %s236 = scalar_lea.vmem [#allocation2], %s235
          %s238 = ssub.s32 64, 64
          %239 = vsyncadd %s233, %s238
          %s240 = smul.addr %s22, 64
          %s241 = scalar_lea.hbm %s0, %s240
          %s243 = sshll.u32 %s236, 4
          %s244 = int_to_ptr.vmem [resolvable:$true] %s243
          %246 = dma.hbm_to_vmem [thread:$0]  %s241, 64, %s244, %s233
        $region28: #{tpu_custom_call.1} parent=23 // pred_fallthru
          _
        // Predicated region
        $region29: #{tpu_custom_call.1} parent=23 // pred_check
          %p247 = pneg %p68
        $region30: #{tpu_custom_call.1} parent=23 // pred_check_branch
          %249 = sbr.rel (%p247) target = $region32
        $region31: #{tpu_custom_call.1} parent=23 // pred_region
          %s250 = sand.u32 %s22, 1
          %s251 = scalar_lea.sflag [#allocation6], %s250
          %s252 = sand.u32 %s58, 1
          %s253 = smul.addr %s252, 64
          %s254 = scalar_lea.vmem [#allocation5], %s253
          %s256 = ssub.s32 1024, 1024
          %257 = vsyncadd %s251, %s256
          %s258 = smul.addr %s22, 16
          %s259 = smul.addr %s258, 64
          %s260 = scalar_lea.hbm %s1, %s259
          %s261 = sshll.u32 %s254, 4
          %s262 = int_to_ptr.vmem [resolvable:$true] %s261
          %267 = dma.hbm_to_vmem [thread:$0]  %s260, 1024, %s262, %s251, 64, 64, 4
        $region32: #{tpu_custom_call.1} parent=23 // pred_fallthru
          _
        // Predicated region
        $region33: #{tpu_custom_call.1} parent=23 // pred_check
          %p268 = pneg %p94
        $region34: #{tpu_custom_call.1} parent=23 // pred_check_branch
          %270 = sbr.rel (%p268) target = $region36
        $region35: #{tpu_custom_call.1} parent=23 // pred_region
          %p271 = scmp.lt.s32.totalorder %s22, 1
          %s272 = scalar_select %p271, %s22, 1
          %s273 = scalar_lea.vmem %s2, %s272
        $region36: #{tpu_custom_call.1} parent=23 // pred_fallthru
          _
      $region24: #{tpu_custom_call.1} parent=5 // pred_fallthru
        _
      %p274 = scmp.le.s32.totalorder 1, %s22
      %p275 = scmp.lt.s32.totalorder %s22, 3
      %p276 = pnand %p274, %p275
      %p277 = pneg %p276
      // Predicated region
      $region37: #{tpu_custom_call.1} parent=5 // pred_check
        _
      $region38: #{tpu_custom_call.1} parent=5 // pred_check_branch
        %279 = sbr.rel (%p276) target = $region40
      $region39: #{tpu_custom_call.1} parent=5 // pred_region
        %s280 = ssub.s32 %s22, 1
        %s281 = sand.u32 %s35, 1
        %s282 = scalar_lea.sflag [#allocation3], %s281
        %s283 = sand.u32 %s35, 1
        %s284 = smul.addr %s283, 4
        %s285 = scalar_lea.vmem [#allocation2], %s284
        // Predicated region
        $region41: #{tpu_custom_call.1} parent=39 // pred_check
          %p286 = pneg %p48
        $region42: #{tpu_custom_call.1} parent=39 // pred_check_branch
          %288 = sbr.rel (%p286) target = $region44
        $region43: #{tpu_custom_call.1} parent=39 // pred_region
          %289 = dma.done %s282, 64
        $region44: #{tpu_custom_call.1} parent=39 // pred_fallthru
          _
        %s290 = sand.u32 %s27, 1
        %s291 = scalar_lea.sflag [#allocation6], %s290
        %s292 = sand.u32 %s61, 1
        %s293 = smul.addr %s292, 64
        %s294 = scalar_lea.vmem [#allocation5], %s293
        // Predicated region
        $region45: #{tpu_custom_call.1} parent=39 // pred_check
          %p295 = pneg %p74
        $region46: #{tpu_custom_call.1} parent=39 // pred_check_branch
          %297 = sbr.rel (%p295) target = $region48
        $region47: #{tpu_custom_call.1} parent=39 // pred_region
          %298 = dma.done %s291, 1024
        $region48: #{tpu_custom_call.1} parent=39 // pred_fallthru
          _
        // Predicated region
        $region49: #{tpu_custom_call.1} parent=39 // pred_check
          %p299 = pneg %p121
        $region50: #{tpu_custom_call.1} parent=39 // pred_check_branch
          %301 = sbr.rel (%p299) target = $region52
        $region51: #{tpu_custom_call.1} parent=39 // pred_region
          %302 = dma.done [#allocation6], 1024
        $region52: #{tpu_custom_call.1} parent=39 // pred_fallthru
          _
        %s303 = sand.u32 %s35, 1
        %s304 = scalar_lea.sflag [#allocation3], %s303
        %s305 = sand.u32 %s35, 1
        %s306 = smul.addr %s305, 4
        %s307 = scalar_lea.vmem [#allocation2], %s306
        %p308 = pneg %p48
        %p309 = pneg %p45
        %s310 = sand.u32 %s27, 1
        %s311 = scalar_lea.sflag [#allocation6], %s310
        %s312 = sand.u32 %s61, 1
        %s313 = smul.addr %s312, 64
        %s314 = scalar_lea.vmem [#allocation5], %s313
        %p315 = pneg %p74
        %p316 = pneg %p71
        %p317 = scmp.lt.s32.totalorder %s27, 1
        %s318 = scalar_select %p317, %s27, 1
        %s319 = scalar_lea.vmem %s2, %s318
        %p320 = pneg %p100
        %p321 = pneg %p97
        %p322 = pneg %p121
        %p323 = pneg %p118
        %p324 = pneg %p142
        %p325 = pneg %p139
        %p326 = pneg %p168
        %p327 = pneg %p165
        %s328 = sand.u32 %s155, 1
        %s329 = scalar_lea.sflag [#allocation4], %s328
        %s330 = sand.u32 %s155, 1
        %s331 = smul.addr %s330, 8
        %s332 = scalar_lea.vmem [#allocation8], %s331
        %p333 = pneg %p194
        %p334 = pneg %p191
        %p335 = scmp.lt.s32.totalorder %s27, 1
        %s336 = scalar_select %p335, %s27, 1
        %s337 = smul.addr %s336, 8
        %s338 = scalar_lea.vmem %s6, %s337
        %p339 = scmp.lt.s32.totalorder %s27, 1
        %s340 = scalar_select %p339, %s27, 1
        %s341 = scalar_lea.vmem %s2, %s340
        %p342 = scmp.lt.s32.totalorder %s27, 1
        %s343 = scalar_select %p342, %s27, 1
        %s344 = smul.addr %s343, 8
        %s345 = scalar_lea.vmem %s6, %s344
        %v347 = vld [vmem:[%s285] sm:$0xf]
        %v348 = vld [vmem:[#allocation7] sm:$0xf]
        %v349 = vld [vmem:[#allocation7 + $0x4] sm:$0xf]
        %v350 = vld [vmem:[#allocation7 + $0x8] sm:$0xf]
        %v351 = vld [vmem:[#allocation7 + $0xc] sm:$0xf]
        %v352 = vld [vmem:[#allocation7 + $0x10] sm:$0xf]
        %v353 = vld [vmem:[#allocation7 + $0x14] sm:$0xf]
        %v354 = vld [vmem:[#allocation7 + $0x18] sm:$0xf]
        %v355 = vld [vmem:[#allocation7 + $0x1c] sm:$0xf]
        %v356 = vld [vmem:[#allocation7 + $0x20] sm:$0xf]
        %v357 = vld [vmem:[#allocation7 + $0x24] sm:$0xf]
        %v358 = vld [vmem:[#allocation7 + $0x28] sm:$0xf]
        %v359 = vld [vmem:[#allocation7 + $0x2c] sm:$0xf]
        %v360 = vld [vmem:[#allocation7 + $0x30] sm:$0xf]
        %v361 = vld [vmem:[#allocation7 + $0x34] sm:$0xf]
        %v362 = vld [vmem:[#allocation7 + $0x38] sm:$0xf]
        %v363 = vld [vmem:[#allocation7 + $0x3c] sm:$0xf]
        %v380 = vunpack.c.l.b16 %v348
        %v381 = vunpack.c.l.b16 %v349
        %v382 = vunpack.c.l.b16 %v350
        %v383 = vunpack.c.l.b16 %v351
        %v384 = vunpack.c.l.b16 %v352
        %v385 = vunpack.c.l.b16 %v353
        %v386 = vunpack.c.l.b16 %v354
        %v387 = vunpack.c.l.b16 %v355
        %v388 = vunpack.c.l.b16 %v356
        %v389 = vunpack.c.l.b16 %v357
        %v390 = vunpack.c.l.b16 %v358
        %v391 = vunpack.c.l.b16 %v359
        %v392 = vunpack.c.l.b16 %v360
        %v393 = vunpack.c.l.b16 %v361
        %v394 = vunpack.c.l.b16 %v362
        %v395 = vunpack.c.l.b16 %v363
        %v396 = vpack.c.b16 %v381, %v380
        %v397 = vpack.c.b16 %v383, %v382
        %v398 = vpack.c.b16 %v385, %v384
        %v399 = vpack.c.b16 %v387, %v386
        %v400 = vpack.c.b16 %v389, %v388
        %v401 = vpack.c.b16 %v391, %v390
        %v402 = vpack.c.b16 %v393, %v392
        %v403 = vpack.c.b16 %v395, %v394
        %412 = vmatprep.subr.bf16.mxu0 0
        %413 = vmatpush1.bf16.msra.mxu0 %v396
        %414 = vmatprep.subr.bf16.mxu0 0
        %415 = vmatpush1.bf16.msra.mxu0 %v397
        %416 = vmatprep.subr.bf16.mxu0 0
        %417 = vmatpush1.bf16.msra.mxu0 %v398
        %418 = vmatprep.subr.bf16.mxu0 0
        %419 = vmatpush1.bf16.msra.mxu0 %v399
        %420 = vmatprep.subr.bf16.mxu0 0
        %421 = vmatpush1.bf16.msra.mxu0 %v400
        %422 = vmatprep.subr.bf16.mxu0 0
        %423 = vmatpush1.bf16.msra.mxu0 %v401
        %424 = vmatprep.subr.bf16.mxu0 0
        %425 = vmatpush1.bf16.msra.mxu0 %v402
        %426 = vmatprep.subr.bf16.mxu0 0
        %427 = vmatpush1.bf16.msra.mxu0 %v403
        %428 = vmatprep.subr.bf16.mxu0 0
        %429 = vmatpush1.bf16.msra.mxu0 0
        %430 = vmatprep.subr.bf16.mxu0 0
        %431 = vmatpush1.bf16.msra.mxu0 0
        %432 = vmatprep.subr.bf16.mxu0 0
        %433 = vmatpush1.bf16.msra.mxu0 0
        %434 = vmatprep.subr.bf16.mxu0 0
        %435 = vmatpush1.bf16.msra.mxu0 0
        %436 = vmatprep.subr.bf16.mxu0 0
        %437 = vmatpush1.bf16.msra.mxu0 0
        %438 = vmatprep.subr.bf16.mxu0 0
        %439 = vmatpush1.bf16.msra.mxu0 0
        %440 = vmatprep.subr.bf16.mxu0 0
        %441 = vmatpush1.bf16.msra.mxu0 0
        %442 = vmatprep.subr.bf16.mxu0 0
        %443 = vmatpush1.bf16.msra.mxu0 0
        %444 = vmatprep.mubr.bf16.mxu0 0
        %445 = vmatmul.mubr.bf16.gmra.mrb[0].mxu0 %v347
        %v446 = vpop.f32.mrb[0].mxu0
        %v447 = vadd.f32 0.0, %v446
        %v448 = vpop.f32.mrb[0].mxu0
        %v449 = vpop.f32.mrb[0].mxu0
        %v450 = vpop.f32.mrb[0].mxu0
        %451 = vdwg.mxu0
        %v452 = vpack.c.bf16 %v447, %v447
        %v453 = vld [vmem:[%s294] sm:$0xf]
        %v454 = vld [vmem:[%s294 + $0x4] sm:$0xf]
        %v455 = vld [vmem:[%s294 + $0x8] sm:$0xf]
        %v456 = vld [vmem:[%s294 + $0xc] sm:$0xf]
        %v457 = vld [vmem:[%s294 + $0x10] sm:$0xf]
        %v458 = vld [vmem:[%s294 + $0x14] sm:$0xf]
        %v459 = vld [vmem:[%s294 + $0x18] sm:$0xf]
        %v460 = vld [vmem:[%s294 + $0x1c] sm:$0xf]
        %v461 = vld [vmem:[%s294 + $0x20] sm:$0xf]
        %v462 = vld [vmem:[%s294 + $0x24] sm:$0xf]
        %v463 = vld [vmem:[%s294 + $0x28] sm:$0xf]
        %v464 = vld [vmem:[%s294 + $0x2c] sm:$0xf]
        %v465 = vld [vmem:[%s294 + $0x30] sm:$0xf]
        %v466 = vld [vmem:[%s294 + $0x34] sm:$0xf]
        %v467 = vld [vmem:[%s294 + $0x38] sm:$0xf]
        %v468 = vld [vmem:[%s294 + $0x3c] sm:$0xf]
        %v485 = vunpack.c.l.b16 %v453
        %v486 = vunpack.c.l.b16 %v454
        %v487 = vunpack.c.l.b16 %v455
        %v488 = vunpack.c.l.b16 %v456
        %v489 = vunpack.c.l.b16 %v457
        %v490 = vunpack.c.l.b16 %v458
        %v491 = vunpack.c.l.b16 %v459
        %v492 = vunpack.c.l.b16 %v460
        %v493 = vunpack.c.l.b16 %v461
        %v494 = vunpack.c.l.b16 %v462
        %v495 = vunpack.c.l.b16 %v463
        %v496 = vunpack.c.l.b16 %v464
        %v497 = vunpack.c.l.b16 %v465
        %v498 = vunpack.c.l.b16 %v466
        %v499 = vunpack.c.l.b16 %v467
        %v500 = vunpack.c.l.b16 %v468
        %v501 = vpack.c.b16 %v486, %v485
        %v502 = vpack.c.b16 %v488, %v487
        %v503 = vpack.c.b16 %v490, %v489
        %v504 = vpack.c.b16 %v492, %v491
        %v505 = vpack.c.b16 %v494, %v493
        %v506 = vpack.c.b16 %v496, %v495
        %v507 = vpack.c.b16 %v498, %v497
        %v508 = vpack.c.b16 %v500, %v499
        %517 = vmatprep.subr.bf16.mxu0 0
        %518 = vmatpush1.bf16.msra.mxu0 %v501
        %519 = vmatprep.subr.bf16.mxu0 0
        %520 = vmatpush1.bf16.msra.mxu0 %v502
        %521 = vmatprep.subr.bf16.mxu0 0
        %522 = vmatpush1.bf16.msra.mxu0 %v503
        %523 = vmatprep.subr.bf16.mxu0 0
        %524 = vmatpush1.bf16.msra.mxu0 %v504
        %525 = vmatprep.subr.bf16.mxu0 0
        %526 = vmatpush1.bf16.msra.mxu0 %v505
        %527 = vmatprep.subr.bf16.mxu0 0
        %528 = vmatpush1.bf16.msra.mxu0 %v506
        %529 = vmatprep.subr.bf16.mxu0 0
        %530 = vmatpush1.bf16.msra.mxu0 %v507
        %531 = vmatprep.subr.bf16.mxu0 0
        %532 = vmatpush1.bf16.msra.mxu0 %v508
        %533 = vmatprep.subr.bf16.mxu0 0
        %534 = vmatpush1.bf16.msra.mxu0 0
        %535 = vmatprep.subr.bf16.mxu0 0
        %536 = vmatpush1.bf16.msra.mxu0 0
        %537 = vmatprep.subr.bf16.mxu0 0
        %538 = vmatpush1.bf16.msra.mxu0 0
        %539 = vmatprep.subr.bf16.mxu0 0
        %540 = vmatpush1.bf16.msra.mxu0 0
        %541 = vmatprep.subr.bf16.mxu0 0
        %542 = vmatpush1.bf16.msra.mxu0 0
        %543 = vmatprep.subr.bf16.mxu0 0
        %544 = vmatpush1.bf16.msra.mxu0 0
        %545 = vmatprep.subr.bf16.mxu0 0
        %546 = vmatpush1.bf16.msra.mxu0 0
        %547 = vmatprep.subr.bf16.mxu0 0
        %548 = vmatpush1.bf16.msra.mxu0 0
        %549 = vmatprep.mubr.bf16.mxu0 0
        %550 = vmatmul.mubr.bf16.gmra.mrb[0].mxu0 %v452
        %v551 = vpop.f32.mrb[0].mxu0
        %v552 = vadd.f32 0.0, %v551
        %v553 = vpop.f32.mrb[0].mxu0
        %v554 = vpop.f32.mrb[0].mxu0
        %v555 = vpop.f32.mrb[0].mxu0
        %556 = vdwg.mxu0
        %v557 = vld [vmem:[%s341] sm:$0x1]
        %vm558 = vcmp.gt.f32.partialorder %v557, 0.5
        %v559 = vsel %vm558, 1, 0
        %v560 = vlaneseq
        %v561 = vshrl.u32 %v560, 7
        %v562 = vsub.s32 0, %v561
        %v563 = vrot.slane %v559, %v562
        %vm564 = vcmp.eq.s32.totalorder %v563, 1
        %v565 = vsel %vm564, -1e+30, %v552
        %566 = vmax.xlane.f32.xlu0 %v565
        %v567 = vpop.xlane.xlu0 %566
        %v568 = vsub.f32 %v565, %v567
        %v569 = vmul.f32 %v568, 1.442695
        %v570 = vpow.pop %v569
        %v571 = vsel %vm564, 0.0, %v570
        %572 = vadd.xlane.f32.xlu0 %v571
        %v573 = vpop.xlane.xlu0 %572
        %v574 = vmax.f32 %v573, 1e-30
        %v575 = vrcp.pop %v574
        %v576 = vmul.f32 %v571, %v575
        %v577 = vunpack.c.l.bf16 %v347
        %v578 = vld [vmem:[%s4] sm:$0x1]
        %v580 = vlaneseq
        %v581 = vshrl.u32 %v580, 7
        %v582 = vsub.s32 0, %v581
        %v583 = vrot.slane %v578, %v582
        %v585 = vmul.f32 %v577, %v583
        %586 = vadd.xlane.f32.xlu0 %v585
        %v587 = vpop.xlane.xlu0 %586
        %v588 = vsub.f32 0.0, %v587
        %v589 = vmul.f32 %v588, 1.442695
        %v590 = vpow.pop %v589
        %v591 = vadd.f32 %v590, 1.0
        %v592 = vrcp.pop %v591
        %v593 = vmul.f32 1.0, %v592
        %vm594 = vcmask 7168
        %595 = vst.msk [vmem:[%s345] sm:$0xff] %vm594, %v593
        %v596 = vsub.f32 1.0, %v593
        %v597 = vmul.f32 %v576, %v596
        %598 = vst [vmem:[%s332] sm:$0xff] %v597
        %s599 = sand.u32 %s155, 1
        %s600 = scalar_lea.sflag [#allocation4], %s599
        %s601 = sand.u32 %s155, 1
        %s602 = smul.addr %s601, 8
        %s603 = scalar_lea.vmem [#allocation8], %s602
        %p604 = scmp.lt.s32.totalorder %s27, 1
        %s605 = scalar_select %p604, %s27, 1
        %s606 = smul.addr %s605, 8
        %s607 = scalar_lea.vmem %s6, %s606
        // Predicated region
        $region53: #{tpu_custom_call.1} parent=39 // pred_check
          %p608 = pneg %p165
        $region54: #{tpu_custom_call.1} parent=39 // pred_check_branch
          %610 = sbr.rel (%p608) target = $region56
        $region55: #{tpu_custom_call.1} parent=39 // pred_region
          %s612 = ssub.s32 128, 128
          %613 = vsyncadd %s600, %s612
          %s614 = smul.addr %s27, 128
          %s615 = scalar_lea.hbm %s5, %s614
          %s617 = sshll.u32 %s603, 4
          %s618 = int_to_ptr.vmem [resolvable:$true] %s617
          %620 = dma.vmem_to_hbm [thread:$0]  %s618, 128, %s615, %s600
        $region56: #{tpu_custom_call.1} parent=39 // pred_fallthru
          _
        // Predicated region
        $region57: #{tpu_custom_call.1} parent=39 // pred_check
          %p621 = pneg %p191
        $region58: #{tpu_custom_call.1} parent=39 // pred_check_branch
          %623 = sbr.rel (%p621) target = $region60
        $region59: #{tpu_custom_call.1} parent=39 // pred_region
          _
        $region60: #{tpu_custom_call.1} parent=39 // pred_fallthru
          _
      $region40: #{tpu_custom_call.1} parent=5 // pred_fallthru
        _
      %p624 = scmp.le.s32.totalorder 2, %s22
      // Predicated region
      $region61: #{tpu_custom_call.1} parent=5 // pred_check
        %p625 = pneg %p624
      $region62: #{tpu_custom_call.1} parent=5 // pred_check_branch
        %627 = sbr.rel (%p625) target = $region64
      $region63: #{tpu_custom_call.1} parent=5 // pred_region
        %s628 = ssub.s32 %s22, 2
        // Predicated region
        $region65: #{tpu_custom_call.1} parent=63 // pred_check
          %p629 = pneg %p171
        $region66: #{tpu_custom_call.1} parent=63 // pred_check_branch
          %631 = sbr.rel (%p629) target = $region68
        $region67: #{tpu_custom_call.1} parent=63 // pred_region
          %s632 = sand.u32 %s156, 1
          %s633 = scalar_lea.sflag [#allocation4], %s632
          %s634 = sand.u32 %s156, 1
          %s635 = smul.addr %s634, 8
          %s636 = scalar_lea.vmem [#allocation8], %s635
          %637 = dma.done %s633, 128
        $region68: #{tpu_custom_call.1} parent=63 // pred_fallthru
          _
        // Predicated region
        $region69: #{tpu_custom_call.1} parent=63 // pred_check
          %p638 = pneg %p197
        $region70: #{tpu_custom_call.1} parent=63 // pred_check_branch
          %640 = sbr.rel (%p638) target = $region72
        $region71: #{tpu_custom_call.1} parent=63 // pred_region
          %p641 = scmp.lt.s32.totalorder %s28, 1
          %s642 = scalar_select %p641, %s28, 1
          %s643 = smul.addr %s642, 8
          %s644 = scalar_lea.vmem %s6, %s643
        $region72: #{tpu_custom_call.1} parent=63 // pred_fallthru
          _
      $region64: #{tpu_custom_call.1} parent=5 // pred_fallthru
        _
    $region6: #{tpu_custom_call.1} parent=1 // loop_footer
      %s26 = sadd.s32 1, %s22
    $region7: #{tpu_custom_call.1} parent=1 // loop_footer_branch
      %21 = sbr.rel target = $region3
    $region8: #{tpu_custom_call.1} parent=1 // loop_exit
      _
    %645 = vsyncpa [#allocation3], 1
    %s646 = scalar_lea.sflag [#allocation3], 1
    %647 = vsyncpa %s646, 1
    %648 = vsyncpa [#allocation6], 1
    %s649 = scalar_lea.sflag [#allocation6], 1
    %650 = vsyncpa %s649, 1
    %651 = vsyncpa [#allocation4], 1
    %s652 = scalar_lea.sflag [#allocation4], 1
    %653 = vsyncpa %s652, 1

</llo_original>
